<compile_context>
chip_gen: v6e
topology: v6e:2x2x1
jax: 0.10.0
libtpu: 0.0.40
codegen_flags: <defaults>
</compile_context>

<pallas_src>
import jax
import jax.numpy as jnp
from jax.experimental import pallas as pl
from jax.experimental.pallas import tpu as pltpu


def _critic_kernel(state_ref, action_ref, w1s_ref, w1a_ref, b1_ref, w2_ref,
                   b2_ref, o_ref):
    # fc1 as a split dot: avoids the wrapper-side concat / extra HBM round trip.
    h = jnp.dot(state_ref[...], w1s_ref[...],
                preferred_element_type=jnp.float32)          # (tb, 32)
    h = h + jnp.dot(action_ref[...], w1a_ref[...],
                    preferred_element_type=jnp.float32)      # (tb, 32)
    h = h + b1_ref[...]                                       # broadcast (1, 32)
    # leaky_relu, PyTorch default negative_slope = 0.01
    h = jnp.where(h > 0, h, 0.01 * h)
    # fc2: (tb,32)x(32,1) would waste the MXU (N=1); do VPU mul + lane reduce.
    y = jnp.sum(h * w2_ref[...], axis=-1) + b2_ref[0, 0]      # (tb,)
    # Lane-dense store: batch lives on the lane axis of the (1, tb) output.
    o_ref[...] = y[None, :].astype(o_ref.dtype)


def _pick_batch_tile(B: int) -> int:
    # Small B: single block. Large B: modest tiles that fit comfortably in
    # v7x's 64 MiB VMEM even with double buffering (512 x 291 f32 ~= 0.6 MiB).
    if B <= 512:
        return B
    for t in (512, 256, 128):
        if B % t == 0:
            return t
    return 512  # non-divisible: Pallas masks the partial last block.


def critic_forward(state, action, params):
    """state: (B, state_dim + hidden_dim), action: (B, action_dim) -> (B, 1)."""
    w1, b1, w2, b2 = params
    state = state.astype(jnp.float32)
    action = action.astype(jnp.float32)
    B, Ks = state.shape
    Ba, Ka = action.shape
    assert Ba == B
    K, H = w1.shape
    assert K == Ks + Ka and b1.shape == (1, H)
    assert w2.shape == (H, 1) and b2.shape == (1, 1)

    # Static weight prep (tiny, weights only; folded/amortized under jit).
    w1s = w1[:Ks]                 # (Ks, H)
    w1a = w1[Ks:]                 # (Ka, H)
    w2_row = w2.reshape(1, H)     # (1, H) row for the VPU reduction
    # TODO(synk): could additionally zero-pad Ks to a multiple of 128 for fully
    # aligned lane loads; skipped to avoid an extra wrapper-side activation op.

    tb = _pick_batch_tile(B)
    grid = (pl.cdiv(B, tb),)

    out = pl.pallas_call(
        _critic_kernel,
        out_shape=jax.ShapeDtypeStruct((1, B), jnp.float32),
        grid=grid,
        in_specs=[
            pl.BlockSpec((tb, Ks), lambda i: (i, 0)),          # state tile
            pl.BlockSpec((tb, Ka), lambda i: (i, 0)),          # action tile
            pl.BlockSpec((Ks, H), lambda i: (0, 0)),           # w1[:Ks] (resident)
            pl.BlockSpec((Ka, H), lambda i: (0, 0)),           # w1[Ks:] (resident)
            pl.BlockSpec((1, H), lambda i: (0, 0)),            # b1
            pl.BlockSpec((1, H), lambda i: (0, 0)),            # w2 as a row
            pl.BlockSpec(memory_space=pltpu.MemorySpace.SMEM),  # b2 scalar
        ],
        out_specs=pl.BlockSpec((1, tb), lambda i: (0, i)),     # lane-dense (1, B)
        compiler_params=pltpu.CompilerParams(
            dimension_semantics=("parallel",),                 # shard batch across TCs
        ),
    )(state, action, w1s, w1a, b1, w2_row, b2)

    # (1, B) -> (B, 1): contiguous, metadata-only reshape.
    return out.reshape(B, 1)


def init_params(key, state_dim=32, hidden_dim=256, action_dim=3):
    """Deterministic synthetic init matching nn.Linear shapes.

    fc1: Linear(state_dim + hidden_dim + action_dim, 32)
    fc2: Linear(32, 1)
    Weights are stored transposed as (in, out) for the kernel.
    """
    in1 = state_dim + hidden_dim + action_dim
    k1, k2, k3, k4 = jax.random.split(key, 4)
    lim1 = 1.0 / jnp.sqrt(jnp.float32(in1))
    lim2 = 1.0 / jnp.sqrt(jnp.float32(32))
    w1 = jax.random.uniform(k1, (in1, 32), jnp.float32, -lim1, lim1)
    b1 = jax.random.uniform(k2, (1, 32), jnp.float32, -lim1, lim1)
    w2 = jax.random.uniform(k3, (32, 1), jnp.float32, -lim2, lim2)
    b2 = jax.random.uniform(k4, (1, 1), jnp.float32, -lim2, lim2)
    return (w1, b1, w2, b2)


def critic_reference(state, action, params):
    w1, b1, w2, b2 = params
    x = jnp.concatenate([state, action], axis=-1)
    h = x @ w1 + b1
    h = jnp.where(h > 0, h, 0.01 * h)
    return h @ w2 + b2


if __name__ == "__main__":
    state_dim, hidden_dim, action_dim = 32, 256, 3
    batch = 4

    key = jax.random.PRNGKey(0)
    kp, ks, ka = jax.random.split(key, 3)
    params = init_params(kp, state_dim, hidden_dim, action_dim)

    # state carries (state_dim + hidden_dim) features, action carries action_dim,
    # so fc1's in_features = state_dim + hidden_dim + action_dim = 291.
    state = jax.random.normal(ks, (batch, state_dim + hidden_dim), jnp.float32)
    action = jax.random.normal(ka, (batch, action_dim), jnp.float32)

    out = critic_forward(state, action, params)
    out = jax.block_until_ready(out)

    ref = critic_reference(state, action, params)
    assert out.shape == (batch, 1)
    assert jnp.allclose(out, ref, atol=1e-5, rtol=1e-5), "mismatch vs reference"

    print("KERNEL_OK")
</pallas_src>

<mosaic_0001>
module attributes {stable_mosaic.version = 11 : i64} {
  func.func @_critic_kernel(%arg0: i32, %arg1: memref<4x288xf32, #tpu.memory_space<vmem>>, %arg2: memref<4x3xf32, #tpu.memory_space<vmem>>, %arg3: memref<288x32xf32, #tpu.memory_space<vmem>>, %arg4: memref<3x32xf32, #tpu.memory_space<vmem>>, %arg5: memref<1x32xf32, #tpu.memory_space<vmem>>, %arg6: memref<1x32xf32, #tpu.memory_space<vmem>>, %arg7: memref<1x1xf32, #tpu.memory_space<smem>>, %arg8: memref<1x4xf32, #tpu.memory_space<vmem>>) attributes {dimension_semantics = [#tpu.dimension_semantics<parallel>], iteration_bounds = array<i64: 1>, scalar_prefetch = 0 : i64, scratch_operands = 0 : i64, tpu.core_type = #tpu.core_type<tc>, window_params = [{transform_indices = @transform_0, window_bounds = array<i64: 4, 288>}, {transform_indices = @transform_1, window_bounds = array<i64: 4, 3>}, {pipeline_mode = #tpu.pipeline_mode<synchronous>, transform_indices = @transform_2, window_bounds = array<i64: 288, 32>}, {pipeline_mode = #tpu.pipeline_mode<synchronous>, transform_indices = @transform_3, window_bounds = array<i64: 3, 32>}, {pipeline_mode = #tpu.pipeline_mode<synchronous>, transform_indices = @transform_4, window_bounds = array<i64: 1, 32>}, {pipeline_mode = #tpu.pipeline_mode<synchronous>, transform_indices = @transform_5, window_bounds = array<i64: 1, 32>}, {transform_indices = @transform_6, window_bounds = array<i64: 1, 1>}, {transform_indices = @transform_7, window_bounds = array<i64: 1, 4>}]} {
    %c0 = arith.constant 0 : index
    %c0_0 = arith.constant 0 : index
    %0 = vector.load %arg1[%c0, %c0_0] : memref<4x288xf32, #tpu.memory_space<vmem>>, vector<4x288xf32>
    %c0_1 = arith.constant 0 : index
    %c0_2 = arith.constant 0 : index
    %1 = vector.load %arg3[%c0_1, %c0_2] : memref<288x32xf32, #tpu.memory_space<vmem>>, vector<288x32xf32>
    %cst = arith.constant dense<0.000000e+00> : vector<4x32xf32>
    %2 = tpu.matmul %0, %1, %cst {dimension_numbers = #tpu.dot_dimension_numbers<[1], [0], [0], [1], [0, 0, 1, 1], [], []>} : vector<4x288xf32>, vector<288x32xf32>, vector<4x32xf32> -> vector<4x32xf32>
    %c0_3 = arith.constant 0 : index
    %c0_4 = arith.constant 0 : index
    %3 = vector.load %arg2[%c0_3, %c0_4] : memref<4x3xf32, #tpu.memory_space<vmem>>, vector<4x3xf32>
    %c0_5 = arith.constant 0 : index
    %c0_6 = arith.constant 0 : index
    %4 = vector.load %arg4[%c0_5, %c0_6] : memref<3x32xf32, #tpu.memory_space<vmem>>, vector<3x32xf32>
    %cst_7 = arith.constant dense<0.000000e+00> : vector<4x32xf32>
    %5 = tpu.matmul %3, %4, %cst_7 {dimension_numbers = #tpu.dot_dimension_numbers<[1], [0], [0], [1], [0, 0, 1, 1], [], []>} : vector<4x3xf32>, vector<3x32xf32>, vector<4x32xf32> -> vector<4x32xf32>
    %6 = arith.addf %2, %5 : vector<4x32xf32>
    %c0_8 = arith.constant 0 : index
    %c0_9 = arith.constant 0 : index
    %7 = vector.load %arg5[%c0_8, %c0_9] : memref<1x32xf32, #tpu.memory_space<vmem>>, vector<1x32xf32>
    %8 = vector.broadcast %7 : vector<1x32xf32> to vector<4x32xf32>
    %9 = arith.addf %6, %8 : vector<4x32xf32>
    %cst_10 = arith.constant 0.000000e+00 : f32
    %10 = vector.broadcast %cst_10 : f32 to vector<4x32xf32>
    %11 = arith.cmpf ogt, %9, %10 : vector<4x32xf32>
    %cst_11 = arith.constant 0.00999999977 : f32
    %12 = vector.broadcast %cst_11 : f32 to vector<4x32xf32>
    %13 = arith.mulf %12, %9 : vector<4x32xf32>
    %14 = arith.select %11, %9, %13 : vector<4x32xi1>, vector<4x32xf32>
    %c0_12 = arith.constant 0 : index
    %c0_13 = arith.constant 0 : index
    %15 = vector.load %arg6[%c0_12, %c0_13] : memref<1x32xf32, #tpu.memory_space<vmem>>, vector<1x32xf32>
    %16 = vector.broadcast %15 : vector<1x32xf32> to vector<4x32xf32>
    %17 = arith.mulf %14, %16 : vector<4x32xf32>
    %cst_14 = arith.constant dense<0.000000e+00> : vector<4xf32>
    %18 = vector.multi_reduction <add>, %17, %cst_14 [1] : vector<4x32xf32> to vector<4xf32>
    %c0_15 = arith.constant 0 : index
    %c0_16 = arith.constant 0 : index
    %19 = memref.load %arg7[%c0_15, %c0_16] : memref<1x1xf32, #tpu.memory_space<smem>>
    %20 = vector.broadcast %19 : f32 to vector<4xf32>
    %21 = arith.addf %18, %20 : vector<4xf32>
    %22 = vector.shape_cast %21 : vector<4xf32> to vector<1x4xf32>
    %c0_17 = arith.constant 0 : index
    %c0_18 = arith.constant 0 : index
    %23 = vector.load %arg8[%c0_17, %c0_18] : memref<1x4xf32, #tpu.memory_space<vmem>>, vector<1x4xf32>
    tpu.vector_store %arg8[%c0_17, %c0_18], %22 {strides = array<i32>} : memref<1x4xf32, #tpu.memory_space<vmem>>, vector<1x4xf32>,
    return
  }
  func.func @transform_0(%arg0: i32) -> (i32, i32) {
    %c0_i32 = arith.constant 0 : i32
    %c0_i32_0 = arith.constant 0 : i32
    return %arg0, %c0_i32 : i32, i32
  }
  func.func @transform_1(%arg0: i32) -> (i32, i32) {
    %c0_i32 = arith.constant 0 : i32
    %c0_i32_0 = arith.constant 0 : i32
    return %arg0, %c0_i32 : i32, i32
  }
  func.func @transform_2(%arg0: i32) -> (i32, i32) {
    %c0_i32 = arith.constant 0 : i32
    %c0_i32_0 = arith.constant 0 : i32
    %c0_i32_1 = arith.constant 0 : i32
    return %c0_i32, %c0_i32_0 : i32, i32
  }
  func.func @transform_3(%arg0: i32) -> (i32, i32) {
    %c0_i32 = arith.constant 0 : i32
    %c0_i32_0 = arith.constant 0 : i32
    %c0_i32_1 = arith.constant 0 : i32
    return %c0_i32, %c0_i32_0 : i32, i32
  }
  func.func @transform_4(%arg0: i32) -> (i32, i32) {
    %c0_i32 = arith.constant 0 : i32
    %c0_i32_0 = arith.constant 0 : i32
    %c0_i32_1 = arith.constant 0 : i32
    return %c0_i32, %c0_i32_0 : i32, i32
  }
  func.func @transform_5(%arg0: i32) -> (i32, i32) {
    %c0_i32 = arith.constant 0 : i32
    %c0_i32_0 = arith.constant 0 : i32
    %c0_i32_1 = arith.constant 0 : i32
    return %c0_i32, %c0_i32_0 : i32, i32
  }
  func.func @transform_6(%arg0: i32) -> (i32, i32) {
    %c0_i32 = arith.constant 0 : i32
    %c0_i32_0 = arith.constant 0 : i32
    %c0_i32_1 = arith.constant 0 : i32
    return %c0_i32, %c0_i32_0 : i32, i32
  }
  func.func @transform_7(%arg0: i32) -> (i32, i32) {
    %c0_i32 = arith.constant 0 : i32
    %c0_i32_0 = arith.constant 0 : i32
    return %c0_i32, %arg0 : i32, i32
  }
}

</mosaic_0001>

<llo_original>
// kernel: tpu_custom_call.1
$region0: #{tpu_custom_call.1}
  #allocation0 [shape = 'u32[]', space=smem, size = 0x4, offset = 0x4, fixed_abs, tag = 'smem constant byte address 0x4 - core index']
  #allocation1 [shape = 'u32[144,128]{1,0:T(1,128)}', space=vmem, size = 0x12000, scoped, tag = 'internal scratch']
  #allocation2 [shape = 'f32[1,1]{1,0:T(1,128)S(6)}', space=smem, size = 0x200, scoped, tag = 'scoped memory for tpu_custom_call.1']
  %s0 = inlined_call_operand.vmem [shape: f32[4,288], index: 0, kind: input, shape index: {}]
  %s1 = inlined_call_operand.vmem [shape: f32[4,3], index: 1, kind: input, shape index: {}]
  %s2 = inlined_call_operand.vmem [shape: f32[288,32], index: 2, kind: input, shape index: {}]
  %s3 = inlined_call_operand.vmem [shape: f32[3,32], index: 3, kind: input, shape index: {}]
  %s4 = inlined_call_operand.vmem [shape: f32[1,32], index: 4, kind: input, shape index: {}]
  %s5 = inlined_call_operand.vmem [shape: f32[1,32], index: 5, kind: input, shape index: {}]
  %s6 = inlined_call_operand.<no memory space> [shape: f32[1,1], index: 6, kind: input, shape index: {}]
  %s7 = inlined_call_operand.hbm [shape: f32[1,4], index: 7, kind: output, shape index: {}]
  %s8 = sld [smem:[#allocation0]]
  $region38: #{tpu_custom_call.1} parent=0
    _
  %s10 = ssub.s32 1, %s8
  %s11 = scalar_select 0, %s10, %s8
  %12 = sst [smem:[#allocation2]] %s6
  $region1: #{tpu_custom_call.1} parent=0
    #allocation3 [shape = 'u8[512]{0}', space=vmem, size = 0x400, scoped, tag = 'output window, operand 0, single buffered']
    #allocation4 [shape = 's32[1]{0}', space=sflag, size = 0x4, scoped, tag = 'scoped memory for tpu_custom_call.1']
    %13 = vsyncpa [#allocation4], 0
    // Predicated region
    $region2: #{tpu_custom_call.1} parent=1 // pred_check
      _
    $region3: #{tpu_custom_call.1} parent=1 // pred_check_branch
      %15 = sbr.rel (0) target = $region5
    $region4: #{tpu_custom_call.1} parent=1 // pred_region
      _
    $region5: #{tpu_custom_call.1} parent=1 // pred_fallthru
      _
    // Predicated region
    $region6: #{tpu_custom_call.1} parent=1 // pred_check
      _
    $region7: #{tpu_custom_call.1} parent=1 // pred_check_branch
      %17 = sbr.rel (0) target = $region9
    $region8: #{tpu_custom_call.1} parent=1 // pred_region
      _
    $region9: #{tpu_custom_call.1} parent=1 // pred_fallthru
      _
    // Predicated region
    $region10: #{tpu_custom_call.1} parent=1 // pred_check
      _
    $region11: #{tpu_custom_call.1} parent=1 // pred_check_branch
      %19 = sbr.rel (0) target = $region13
    $region12: #{tpu_custom_call.1} parent=1 // pred_region
      _
    $region13: #{tpu_custom_call.1} parent=1 // pred_fallthru
      _
    // Predicated region
    $region14: #{tpu_custom_call.1} parent=1 // pred_check
      _
    $region15: #{tpu_custom_call.1} parent=1 // pred_check_branch
      %21 = sbr.rel (0) target = $region17
    $region16: #{tpu_custom_call.1} parent=1 // pred_region
      _
    $region17: #{tpu_custom_call.1} parent=1 // pred_fallthru
      _
    // Predicated region
    $region18: #{tpu_custom_call.1} parent=1 // pred_check
      _
    $region19: #{tpu_custom_call.1} parent=1 // pred_check_branch
      %23 = sbr.rel (0) target = $region21
    $region20: #{tpu_custom_call.1} parent=1 // pred_region
      _
    $region21: #{tpu_custom_call.1} parent=1 // pred_fallthru
      _
    // Predicated region
    $region22: #{tpu_custom_call.1} parent=1 // pred_check
      _
    $region23: #{tpu_custom_call.1} parent=1 // pred_check_branch
      %25 = sbr.rel (0) target = $region25
    $region24: #{tpu_custom_call.1} parent=1 // pred_region
      _
    $region25: #{tpu_custom_call.1} parent=1 // pred_fallthru
      _
    // Predicated region
    $region26: #{tpu_custom_call.1} parent=1 // pred_check
      _
    $region27: #{tpu_custom_call.1} parent=1 // pred_check_branch
      %27 = sbr.rel (0) target = $region29
    $region28: #{tpu_custom_call.1} parent=1 // pred_region
      _
    $region29: #{tpu_custom_call.1} parent=1 // pred_fallthru
      _
    %v28 = vld [vmem:[%s0] sm:$0xff]
    %v29 = vld [vmem:[%s0 + $0x8] sm:$0xf]
    %v30 = vld [vmem:[%s2] sm:$0xff]
    %v31 = vld [vmem:[%s2 + $0x8] sm:$0xff]
    %v32 = vld [vmem:[%s2 + $0x10] sm:$0xff]
    %v33 = vld [vmem:[%s2 + $0x18] sm:$0xff]
    %v34 = vld [vmem:[%s2 + $0x20] sm:$0xff]
    %v35 = vld [vmem:[%s2 + $0x28] sm:$0xff]
    %v36 = vld [vmem:[%s2 + $0x30] sm:$0xff]
    %v37 = vld [vmem:[%s2 + $0x38] sm:$0xff]
    %v38 = vld [vmem:[%s2 + $0x40] sm:$0xff]
    %v39 = vld [vmem:[%s2 + $0x48] sm:$0xff]
    %v40 = vld [vmem:[%s2 + $0x50] sm:$0xff]
    %v41 = vld [vmem:[%s2 + $0x58] sm:$0xff]
    %v42 = vld [vmem:[%s2 + $0x60] sm:$0xff]
    %v43 = vld [vmem:[%s2 + $0x68] sm:$0xff]
    %v44 = vld [vmem:[%s2 + $0x70] sm:$0xff]
    %v45 = vld [vmem:[%s2 + $0x78] sm:$0xff]
    %v46 = vld [vmem:[%s2 + $0x80] sm:$0xff]
    %v47 = vld [vmem:[%s2 + $0x88] sm:$0xff]
    %v48 = vld [vmem:[%s2 + $0x90] sm:$0xff]
    %v49 = vld [vmem:[%s2 + $0x98] sm:$0xff]
    %v50 = vld [vmem:[%s2 + $0xa0] sm:$0xff]
    %v51 = vld [vmem:[%s2 + $0xa8] sm:$0xff]
    %v52 = vld [vmem:[%s2 + $0xb0] sm:$0xff]
    %v53 = vld [vmem:[%s2 + $0xb8] sm:$0xff]
    %v54 = vld [vmem:[%s2 + $0xc0] sm:$0xff]
    %v55 = vld [vmem:[%s2 + $0xc8] sm:$0xff]
    %v56 = vld [vmem:[%s2 + $0xd0] sm:$0xff]
    %v57 = vld [vmem:[%s2 + $0xd8] sm:$0xff]
    %v58 = vld [vmem:[%s2 + $0xe0] sm:$0xff]
    %v59 = vld [vmem:[%s2 + $0xe8] sm:$0xff]
    %v60 = vld [vmem:[%s2 + $0xf0] sm:$0xff]
    %v61 = vld [vmem:[%s2 + $0xf8] sm:$0xff]
    %v62 = vld [vmem:[%s2 + $0x100] sm:$0xff]
    %v63 = vld [vmem:[%s2 + $0x108] sm:$0xff]
    %v64 = vld [vmem:[%s2 + $0x110] sm:$0xff]
    %v65 = vld [vmem:[%s2 + $0x118] sm:$0xff]
    %v66 = vld [vmem:[%s1] sm:$0xf]
    %v67 = vld [vmem:[%s3] sm:$0x7]
    %vm68 = vcmask 23552
    %v70 = vsel %vm68, %v66, 0
    %vm72 = vcmask 1042432
    %v74 = vsel %vm72, %v67, 0
    %76 = vmatprep.subr.mxu0 0.0
    %77 = vmatpush1.msra.mxu0 0.0
    %78 = vmatprep.subr.mxu0 0.0
    %79 = vmatpush1.msra.mxu0 0.0
    %80 = vmatprep.subr.mxu0 0.0
    %81 = vmatpush1.msra.mxu0 0.0
    %82 = vmatprep.subr.mxu0 0.0
    %83 = vmatpush1.msra.mxu0 0.0
    %84 = vmatprep.subr.mxu0 0.0
    %85 = vmatpush1.msra.mxu0 0.0
    %86 = vmatprep.subr.mxu0 0.0
    %87 = vmatpush1.msra.mxu0 0.0
    %88 = vmatprep.subr.mxu0 0.0
    %89 = vmatpush1.msra.mxu0 0.0
    %90 = vmatprep.subr.mxu0 0.0
    %91 = vmatpush1.msra.mxu0 0.0
    %92 = vmatprep.subr.mxu0 0.0
    %93 = vmatpush1.msra.mxu0 0.0
    %94 = vmatprep.subr.mxu0 0.0
    %95 = vmatpush1.msra.mxu0 0.0
    %96 = vmatprep.subr.mxu0 0.0
    %97 = vmatpush1.msra.mxu0 0.0
    %98 = vmatprep.subr.mxu0 0.0
    %99 = vmatpush1.msra.mxu0 0.0
    %100 = vmatprep.subr.mxu0 0.0
    %101 = vmatpush1.msra.mxu0 0.0
    %102 = vmatprep.subr.mxu0 0.0
    %103 = vmatpush1.msra.mxu0 0.0
    %104 = vmatprep.subr.mxu0 0.0
    %105 = vmatpush1.msra.mxu0 0.0
    %106 = vmatprep.subr.mxu0 0.0
    %107 = vmatpush1.msra.mxu0 %v74
    %108 = vmatprep.subr.mxu0 0.0
    %109 = vmatpush2.msra.mxu0 0.0
    %110 = vmatprep.subr.mxu0 0.0
    %111 = vmatpush2.msra.mxu0 0.0
    %112 = vmatprep.subr.mxu0 0.0
    %113 = vmatpush2.msra.mxu0 0.0
    %114 = vmatprep.subr.mxu0 0.0
    %115 = vmatpush2.msra.mxu0 0.0
    %116 = vmatprep.subr.mxu0 0.0
    %117 = vmatpush2.msra.mxu0 0.0
    %118 = vmatprep.subr.mxu0 0.0
    %119 = vmatpush2.msra.mxu0 0.0
    %120 = vmatprep.subr.mxu0 0.0
    %121 = vmatpush2.msra.mxu0 0.0
    %122 = vmatprep.subr.mxu0 0.0
    %123 = vmatpush2.msra.mxu0 0.0
    %124 = vmatprep.subr.mxu0 0.0
    %125 = vmatpush2.msra.mxu0 0.0
    %126 = vmatprep.subr.mxu0 0.0
    %127 = vmatpush2.msra.mxu0 0.0
    %128 = vmatprep.subr.mxu0 0.0
    %129 = vmatpush2.msra.mxu0 0.0
    %130 = vmatprep.subr.mxu0 0.0
    %131 = vmatpush2.msra.mxu0 0.0
    %132 = vmatprep.subr.mxu0 0.0
    %133 = vmatpush2.msra.mxu0 0.0
    %134 = vmatprep.subr.mxu0 0.0
    %135 = vmatpush2.msra.mxu0 0.0
    %136 = vmatprep.subr.mxu0 0.0
    %137 = vmatpush2.msra.mxu0 0.0
    %138 = vmatprep.subr.mxu0 0.0
    %139 = vmatpush2.msra.mxu0 0.0
    %140 = vmatprep.mubr.f32.mxu0 0.0
    %141 = vmatmul.mubr.f32.gmra.mxu0 %v70
    %v142 = vpop.f32.mrf.mxu0
    %v143 = vadd.f32 0.0, %v142
    %v144 = vpop.f32.mrf.mxu0
    %145 = vdwg.mxu0
    %v148 = vcombine.high %v28, %v28
    %vm150 = vcmask 261120
    %v151 = vsel %vm150, %v29, 0
    %153 = vmatprep.subr.mxu0 0.0
    %154 = vmatpush1.msra.mxu0 %v45
    %155 = vmatprep.subr.mxu0 0.0
    %156 = vmatpush1.msra.mxu0 %v44
    %157 = vmatprep.subr.mxu0 0.0
    %158 = vmatpush1.msra.mxu0 %v43
    %159 = vmatprep.subr.mxu0 0.0
    %160 = vmatpush1.msra.mxu0 %v42
    %161 = vmatprep.subr.mxu0 0.0
    %162 = vmatpush1.msra.mxu0 %v41
    %163 = vmatprep.subr.mxu0 0.0
    %164 = vmatpush1.msra.mxu0 %v40
    %165 = vmatprep.subr.mxu0 0.0
    %166 = vmatpush1.msra.mxu0 %v39
    %167 = vmatprep.subr.mxu0 0.0
    %168 = vmatpush1.msra.mxu0 %v38
    %169 = vmatprep.subr.mxu0 0.0
    %170 = vmatpush1.msra.mxu0 %v37
    %171 = vmatprep.subr.mxu0 0.0
    %172 = vmatpush1.msra.mxu0 %v36
    %173 = vmatprep.subr.mxu0 0.0
    %174 = vmatpush1.msra.mxu0 %v35
    %175 = vmatprep.subr.mxu0 0.0
    %176 = vmatpush1.msra.mxu0 %v34
    %177 = vmatprep.subr.mxu0 0.0
    %178 = vmatpush1.msra.mxu0 %v33
    %179 = vmatprep.subr.mxu0 0.0
    %180 = vmatpush1.msra.mxu0 %v32
    %181 = vmatprep.subr.mxu0 0.0
    %182 = vmatpush1.msra.mxu0 %v31
    %183 = vmatprep.subr.mxu0 0.0
    %184 = vmatpush1.msra.mxu0 %v30
    %185 = vmatprep.subr.mxu0 0.0
    %186 = vmatpush2.msra.mxu0 %v61
    %187 = vmatprep.subr.mxu0 0.0
    %188 = vmatpush2.msra.mxu0 %v60
    %189 = vmatprep.subr.mxu0 0.0
    %190 = vmatpush2.msra.mxu0 %v59
    %191 = vmatprep.subr.mxu0 0.0
    %192 = vmatpush2.msra.mxu0 %v58
    %193 = vmatprep.subr.mxu0 0.0
    %194 = vmatpush2.msra.mxu0 %v57
    %195 = vmatprep.subr.mxu0 0.0
    %196 = vmatpush2.msra.mxu0 %v56
    %197 = vmatprep.subr.mxu0 0.0
    %198 = vmatpush2.msra.mxu0 %v55
    %199 = vmatprep.subr.mxu0 0.0
    %200 = vmatpush2.msra.mxu0 %v54
    %201 = vmatprep.subr.mxu0 0.0
    %202 = vmatpush2.msra.mxu0 %v53
    %203 = vmatprep.subr.mxu0 0.0
    %204 = vmatpush2.msra.mxu0 %v52
    %205 = vmatprep.subr.mxu0 0.0
    %206 = vmatpush2.msra.mxu0 %v51
    %207 = vmatprep.subr.mxu0 0.0
    %208 = vmatpush2.msra.mxu0 %v50
    %209 = vmatprep.subr.mxu0 0.0
    %210 = vmatpush2.msra.mxu0 %v49
    %211 = vmatprep.subr.mxu0 0.0
    %212 = vmatpush2.msra.mxu0 %v48
    %213 = vmatprep.subr.mxu0 0.0
    %214 = vmatpush2.msra.mxu0 %v47
    %215 = vmatprep.subr.mxu0 0.0
    %216 = vmatpush2.msra.mxu0 %v46
    %217 = vmatprep.mubr.f32.mxu0 %v148
    %218 = vmatmul.mubr.f32.gmra.mxu0 %v28
    %v219 = vpop.f32.mrf.mxu0
    %v220 = vadd.f32 %v143, %v219
    %v221 = vpop.f32.mrf.mxu0
    %222 = vdwg.mxu0
    %223 = vmatprep.subr.mxu0 0.0
    %224 = vmatpush1.msra.mxu0 0.0
    %225 = vmatprep.subr.mxu0 0.0
    %226 = vmatpush1.msra.mxu0 0.0
    %227 = vmatprep.subr.mxu0 0.0
    %228 = vmatpush1.msra.mxu0 0.0
    %229 = vmatprep.subr.mxu0 0.0
    %230 = vmatpush1.msra.mxu0 0.0
    %231 = vmatprep.subr.mxu0 0.0
    %232 = vmatpush1.msra.mxu0 0.0
    %233 = vmatprep.subr.mxu0 0.0
    %234 = vmatpush1.msra.mxu0 0.0
    %235 = vmatprep.subr.mxu0 0.0
    %236 = vmatpush1.msra.mxu0 0.0
    %237 = vmatprep.subr.mxu0 0.0
    %238 = vmatpush1.msra.mxu0 0.0
    %239 = vmatprep.subr.mxu0 0.0
    %240 = vmatpush1.msra.mxu0 0.0
    %241 = vmatprep.subr.mxu0 0.0
    %242 = vmatpush1.msra.mxu0 0.0
    %243 = vmatprep.subr.mxu0 0.0
    %244 = vmatpush1.msra.mxu0 0.0
    %245 = vmatprep.subr.mxu0 0.0
    %246 = vmatpush1.msra.mxu0 0.0
    %247 = vmatprep.subr.mxu0 0.0
    %248 = vmatpush1.msra.mxu0 %v65
    %249 = vmatprep.subr.mxu0 0.0
    %250 = vmatpush1.msra.mxu0 %v64
    %251 = vmatprep.subr.mxu0 0.0
    %252 = vmatpush1.msra.mxu0 %v63
    %253 = vmatprep.subr.mxu0 0.0
    %254 = vmatpush1.msra.mxu0 %v62
    %255 = vmatprep.subr.mxu0 0.0
    %256 = vmatpush2.msra.mxu0 0.0
    %257 = vmatprep.subr.mxu0 0.0
    %258 = vmatpush2.msra.mxu0 0.0
    %259 = vmatprep.subr.mxu0 0.0
    %260 = vmatpush2.msra.mxu0 0.0
    %261 = vmatprep.subr.mxu0 0.0
    %262 = vmatpush2.msra.mxu0 0.0
    %263 = vmatprep.subr.mxu0 0.0
    %264 = vmatpush2.msra.mxu0 0.0
    %265 = vmatprep.subr.mxu0 0.0
    %266 = vmatpush2.msra.mxu0 0.0
    %267 = vmatprep.subr.mxu0 0.0
    %268 = vmatpush2.msra.mxu0 0.0
    %269 = vmatprep.subr.mxu0 0.0
    %270 = vmatpush2.msra.mxu0 0.0
    %271 = vmatprep.subr.mxu0 0.0
    %272 = vmatpush2.msra.mxu0 0.0
    %273 = vmatprep.subr.mxu0 0.0
    %274 = vmatpush2.msra.mxu0 0.0
    %275 = vmatprep.subr.mxu0 0.0
    %276 = vmatpush2.msra.mxu0 0.0
    %277 = vmatprep.subr.mxu0 0.0
    %278 = vmatpush2.msra.mxu0 0.0
    %279 = vmatprep.subr.mxu0 0.0
    %280 = vmatpush2.msra.mxu0 0.0
    %281 = vmatprep.subr.mxu0 0.0
    %282 = vmatpush2.msra.mxu0 0.0
    %283 = vmatprep.subr.mxu0 0.0
    %284 = vmatpush2.msra.mxu0 0.0
    %285 = vmatprep.subr.mxu0 0.0
    %286 = vmatpush2.msra.mxu0 0.0
    %287 = vmatprep.mubr.f32.mxu0 0.0
    %288 = vmatmul.mubr.f32.gmra.mxu0 %v151
    %v289 = vpop.f32.mrf.mxu0
    %v290 = vadd.f32 %v220, %v289
    %v291 = vpop.f32.mrf.mxu0
    %292 = vdwg.mxu0
    %v293 = vld [vmem:[%s4] sm:$0x1]
    %v295 = vlaneseq
    %v296 = vshrl.u32 %v295, 7
    %v297 = vsub.s32 0, %v296
    %v298 = vrot.slane %v293, %v297
    %v300 = vadd.f32 %v290, %v298
    %vm301 = vcmp.gt.f32.partialorder %v300, 0.0
    %v302 = vmul.f32 %v300, 0.01
    %v303 = vsel %vm301, %v300, %v302
    %v304 = vld [vmem:[%s5] sm:$0x1]
    %v306 = vlaneseq
    %v307 = vshrl.u32 %v306, 7
    %v308 = vsub.s32 0, %v307
    %v309 = vrot.slane %v304, %v308
    %v311 = vmul.f32 %v303, %v309
    %vm312 = vcmask 257024
    %v313 = vsel %vm312, %v311, 0.0
    %314 = vadd.xlane.f32.xlu0 %v313
    %v315 = vpop.xlane.xlu0 %314
    %s316 = sld [smem:[#allocation2]]
    %v317 = vstv %s316
    %v318 = vadd.f32 %v315, %v317
    %v320 = vlaneseq
    %v321 = vand.u32 %v320, 127
    %v322 = vlaneseq
    %v323 = vshrl.u32 %v322, 7
    %v324 = vsub.s32 %v321, %v323
    %v325 = vrot.slane %v318, %v324
    %vm327 = vcmask 24576
    %328 = vst.msk [vmem:[#allocation3] sm:$0x1] %vm327, %v325
    // Predicated region
    $region30: #{tpu_custom_call.1} parent=1 // pred_check
      _
    $region31: #{tpu_custom_call.1} parent=1 // pred_check_branch
      %330 = sbr.rel (0) target = $region33
    $region32: #{tpu_custom_call.1} parent=1 // pred_region
      %s332 = ssub.s32 16, 16
      %333 = vsyncadd [#allocation4], %s332
      %s335 = sshll.u32 [#allocation3], 4
      %s336 = int_to_ptr.vmem [resolvable:$true] %s335
      %338 = dma.vmem_to_hbm [thread:$0]  %s336, 16, %s7, [#allocation4]
    $region33: #{tpu_custom_call.1} parent=1 // pred_fallthru
      _
    // Predicated region
    $region34: #{tpu_custom_call.1} parent=1 // pred_check
      _
    $region35: #{tpu_custom_call.1} parent=1 // pred_check_branch
      %340 = sbr.rel (0) target = $region37
    $region36: #{tpu_custom_call.1} parent=1 // pred_region
      %341 = dma.done [#allocation4], 16
    $region37: #{tpu_custom_call.1} parent=1 // pred_fallthru
      _
    %342 = vsyncpa [#allocation4], 1

</llo_original>
